<compile_context>
chip_gen: v6e
topology: v6e:2x2x1
jax: 0.10.0
libtpu: 0.0.40
codegen_flags: <defaults>
</compile_context>

<pallas_src>
import jax
import jax.numpy as jnp
from jax import lax
from jax.experimental import pallas as pl
from jax.experimental.pallas import tpu as pltpu

# Synthetic hyper-parameters (the original file defines these as globals).
TENSOR_INPUT_SIZE = 32      # stand-in for the real input feature size
NUM_ACTIONS = 16            # stand-in for NUM_UNITS
HIDDEN = 64
LEAKY_SLOPE = 0.01          # nn.LeakyReLU() default negative_slope

LANE = 128                  # TPU lane width for the hidden activations
N_LAYERS = 4                # 3 trunk layers + 1 fused (action|value) head
HEAD_W = 32                 # fused head width: cols 0:A = actions, col A = value
TILE_MAX_ROWS = 2048        # max batch-tile rows (multiple of 8)
_NEG_LARGE = -1e30          # mask value for padded softmax columns
MATMUL_DTYPE = jnp.bfloat16 # matmul operand dtype (f32 accumulation)


def _leaky_relu(x):
    return jnp.where(x > 0, x, LEAKY_SLOPE * x)


def _round_up(n, m):
    return ((n + m - 1) // m) * m


def a2c_kernel(x_ref, w_ref, b_ref, logp_ref, val_ref):
    """Fused forward: 3-layer MLP trunk + merged action/value head.

    x_ref:    [TB, F]         input rows (F = TENSOR_INPUT_SIZE, full last dim)
    w_ref:    [4*128, 128]    per-layer zero-padded weight blocks (bf16)
    b_ref:    [8, 128]        per-layer 128-wide bias rows (rows 0..3 used, f32)
    logp_ref: [TB, A]         action log-probs
    val_ref:  [TB, 1]         state values
    """
    b_all = b_ref[...]                          # single [8,128] f32 vreg load
    h = x_ref[...].astype(jnp.float32)          # [TB, F]

    def trunk_layer(h, idx, k):
        # Static [k,128] slice of the packed bf16 weight slab.
        w = w_ref[idx * LANE: idx * LANE + k, :]
        y = jnp.dot(h.astype(MATMUL_DTYPE), w,
                    preferred_element_type=jnp.float32)
        return _leaky_relu(y + b_all[idx:idx + 1, :])

    # Trunk (self.seq).  Layer 0 contracts over K=F=32 (x is not padded);
    # padded hidden columns (>=HIDDEN) stay exactly zero through LeakyReLU.
    h = trunk_layer(h, 0, TENSOR_INPUT_SIZE)    # [TB, 128]
    h = trunk_layer(h, 1, LANE)
    h = trunk_layer(h, 2, LANE)

    # Fused (action | value) head: only HEAD_W output lanes are real, so the
    # weight block is sliced to 32 columns and all post-matmul math stays
    # 32 lanes wide (cheaper exp/softmax, narrow stores).
    w_head = w_ref[3 * LANE: 4 * LANE, :HEAD_W]                 # [128, 32] bf16
    head = jnp.dot(h.astype(MATMUL_DTYPE), w_head,
                   preferred_element_type=jnp.float32)
    head = head + b_all[3:4, :HEAD_W]                           # [TB, 32]

    # Numerically-stable log-softmax over the action columns only.
    col = lax.broadcasted_iota(jnp.int32, head.shape, 1)
    is_action = col < NUM_ACTIONS
    masked = jnp.where(is_action, head, jnp.float32(_NEG_LARGE))
    m = jnp.max(masked, axis=1, keepdims=True)
    shifted = masked - m
    lse = jnp.log(jnp.sum(jnp.exp(shifted), axis=1, keepdims=True))
    logp = shifted - lse

    logp_ref[...] = logp[:, :NUM_ACTIONS].astype(logp_ref.dtype)
    val_ref[...] = head[:, NUM_ACTIONS:NUM_ACTIONS + 1].astype(val_ref.dtype)


def pack_params(params):
    """Pack per-layer [in,out] weights / biases into two VMEM slabs.

    Returns:
      w_packed: [4*128, 128] bf16 — each layer's weight zero-padded to a
                128x128 block; the action+value heads are fused into block 3
                (cols 0:A = action weights, col A = value weights).
      b_packed: [8, 128] f32 — one 128-wide bias row per layer (rows 0..3).
    """
    def pad_w(w):
        w = jnp.asarray(w, jnp.float32)
        fi, fo = w.shape
        return jnp.zeros((LANE, LANE), jnp.float32).at[:fi, :fo].set(w)

    def pad_b(b):
        b = jnp.asarray(b, jnp.float32).reshape(-1)
        return jnp.zeros((LANE,), jnp.float32).at[: b.shape[0]].set(b)

    # Fuse action + value heads: [HIDDEN, A+1] weight, [A+1] bias.
    w_head = jnp.concatenate([params["wa"], params["wv"]], axis=1)
    b_head = jnp.concatenate(
        [jnp.asarray(params["ba"]).reshape(-1),
         jnp.asarray(params["bv"]).reshape(-1)])

    w_packed = jnp.concatenate(
        [pad_w(params["w1"]), pad_w(params["w2"]),
         pad_w(params["w3"]), pad_w(w_head)], axis=0)          # [512, 128] f32

    b_rows = jnp.stack(
        [pad_b(params["b1"]), pad_b(params["b2"]),
         pad_b(params["b3"]), pad_b(b_head)], axis=0)          # [4, 128]
    b_packed = jnp.concatenate(
        [b_rows, jnp.zeros((8 - N_LAYERS, LANE), jnp.float32)], axis=0)  # [8,128]

    return w_packed.astype(MATMUL_DTYPE), b_packed


def a2c_forward(x, w_packed, b_packed):
    """x: [B, TENSOR_INPUT_SIZE] f32.  Returns (log_probs [B, A], values [B])."""
    B, F = x.shape

    # Batch tile: multiple of 8, capped at TILE_MAX_ROWS, and chosen so the
    # grid has >=2 steps whenever B allows (v7x megacore gets both TCs busy).
    tb = max(8, min(TILE_MAX_ROWS, _round_up(pl.cdiv(B, 2), 8)))
    grid = (pl.cdiv(B, tb),)

    itemsize = lambda a: a.dtype.itemsize
    cost = pl.CostEstimate(
        flops=int(2 * B * (F * HIDDEN + 2 * HIDDEN * HIDDEN
                           + HIDDEN * (NUM_ACTIONS + 1))),
        transcendentals=int(B * (NUM_ACTIONS + 1)),
        bytes_accessed=int(B * F * itemsize(x)
                           + w_packed.size * itemsize(w_packed)
                           + b_packed.size * itemsize(b_packed)
                           + B * (NUM_ACTIONS + 1) * 4),
    )

    log_probs, values = pl.pallas_call(
        a2c_kernel,
        out_shape=(jax.ShapeDtypeStruct((B, NUM_ACTIONS), jnp.float32),
                   jax.ShapeDtypeStruct((B, 1), jnp.float32)),
        grid=grid,
        in_specs=[
            # x: last dim is the full array dim (F=32), so no lane padding.
            pl.BlockSpec((tb, F), lambda i: (i, 0)),
            # Constant index_maps: weights/biases stay VMEM-resident across
            # batch-grid steps (no re-DMA).
            pl.BlockSpec((N_LAYERS * LANE, LANE), lambda i: (0, 0)),
            pl.BlockSpec((8, LANE), lambda i: (0, 0)),
        ],
        out_specs=(
            pl.BlockSpec((tb, NUM_ACTIONS), lambda i: (i, 0)),
            pl.BlockSpec((tb, 1), lambda i: (i, 0)),
        ),
        compiler_params=pltpu.CompilerParams(
            dimension_semantics=("parallel",)),
        cost_estimate=cost,
    )(x.astype(jnp.float32), w_packed, b_packed)

    # state_values.squeeze(1) — metadata-only reshape, no extra HBM pass.
    return log_probs, values.reshape(B)


def init_params(key):
    """Deterministic synthetic parameters. Weights stored as [in, out]
    (i.e. already transposed relative to PyTorch's [out, in])."""
    keys = jax.random.split(key, 10)

    def lin_init(kw, kb, fan_in, fan_out):
        bound = 1.0 / jnp.sqrt(jnp.float32(fan_in))
        w = jax.random.uniform(kw, (fan_in, fan_out), jnp.float32, -bound, bound)
        b = jax.random.uniform(kb, (1, fan_out), jnp.float32, -bound, bound)
        return w, b

    w1, b1 = lin_init(keys[0], keys[1], TENSOR_INPUT_SIZE, HIDDEN)
    w2, b2 = lin_init(keys[2], keys[3], HIDDEN, HIDDEN)
    w3, b3 = lin_init(keys[4], keys[5], HIDDEN, HIDDEN)
    wa, ba = lin_init(keys[6], keys[7], HIDDEN, NUM_ACTIONS)
    wv, bv = lin_init(keys[8], keys[9], HIDDEN, 1)
    return {"w1": w1, "b1": b1, "w2": w2, "b2": b2, "w3": w3, "b3": b3,
            "wa": wa, "ba": ba, "wv": wv, "bv": bv}


def reference_forward(x, params):
    """Pure-JAX f32 reference for a correctness check."""
    def linear(h, w, b):
        return h @ w + b
    h = _leaky_relu(linear(x, params["w1"], params["b1"]))
    h = _leaky_relu(linear(h, params["w2"], params["b2"]))
    h = _leaky_relu(linear(h, params["w3"], params["b3"]))
    logits = linear(h, params["wa"], params["ba"])
    logp = logits - jax.scipy.special.logsumexp(logits, axis=1, keepdims=True)
    val = linear(h, params["wv"], params["bv"])[:, 0]
    return logp, val


if __name__ == "__main__":
    key = jax.random.PRNGKey(0)
    k_param, k_x = jax.random.split(key)

    params = init_params(k_param)
    w_packed, b_packed = pack_params(params)
    fwd = jax.jit(a2c_forward)

    # B=8: single full tile.  B=20: two grid steps with a clipped edge tile.
    for B in (8, 20):
        x = jax.random.normal(jax.random.fold_in(k_x, B),
                              (B, TENSOR_INPUT_SIZE), jnp.float32)
        logp, values = fwd(x, w_packed, b_packed)
        jax.block_until_ready((logp, values))

        ref_logp, ref_values = reference_forward(x, params)
        assert logp.shape == (B, NUM_ACTIONS)
        assert values.shape == (B,)
        # bf16 matmul operands (f32 accumulation) -> loosened tolerance vs the
        # pure-f32 reference.
        assert jnp.allclose(logp, ref_logp, atol=5e-2, rtol=5e-2), (
            f"log-prob mismatch at B={B}: "
            f"max abs err {jnp.max(jnp.abs(logp - ref_logp))}")
        assert jnp.allclose(values, ref_values, atol=5e-2, rtol=5e-2), (
            f"value mismatch at B={B}: "
            f"max abs err {jnp.max(jnp.abs(values - ref_values))}")

    print("KERNEL_OK")
</pallas_src>

<mosaic_0001>
module attributes {stable_mosaic.version = 11 : i64} {
  func.func @a2c_kernel(%arg0: i32, %arg1: memref<8x32xf32, #tpu.memory_space<vmem>>, %arg2: memref<512x128xbf16, #tpu.memory_space<vmem>>, %arg3: memref<8x128xf32, #tpu.memory_space<vmem>>, %arg4: memref<8x16xf32, #tpu.memory_space<vmem>>, %arg5: memref<8x1xf32, #tpu.memory_space<vmem>>) attributes {dimension_semantics = [#tpu.dimension_semantics<parallel>], iteration_bounds = array<i64: 1>, scalar_prefetch = 0 : i64, scratch_operands = 0 : i64, tpu.core_type = #tpu.core_type<tc>, window_params = [{transform_indices = @transform_0, window_bounds = array<i64: 8, 32>}, {pipeline_mode = #tpu.pipeline_mode<synchronous>, transform_indices = @transform_1, window_bounds = array<i64: 512, 128>}, {pipeline_mode = #tpu.pipeline_mode<synchronous>, transform_indices = @transform_2, window_bounds = array<i64: 8, 128>}, {transform_indices = @transform_3, window_bounds = array<i64: 8, 16>}, {transform_indices = @transform_4, window_bounds = array<i64: 8, 1>}]} {
    %c0 = arith.constant 0 : index
    %c0_0 = arith.constant 0 : index
    %0 = vector.load %arg3[%c0, %c0_0] : memref<8x128xf32, #tpu.memory_space<vmem>>, vector<8x128xf32>
    %c0_1 = arith.constant 0 : index
    %c0_2 = arith.constant 0 : index
    %1 = vector.load %arg1[%c0_1, %c0_2] : memref<8x32xf32, #tpu.memory_space<vmem>>, vector<8x32xf32>
    %c0_3 = arith.constant 0 : index
    %c0_4 = arith.constant 0 : index
    %2 = vector.load %arg2[%c0_3, %c0_4] : memref<512x128xbf16, #tpu.memory_space<vmem>>, vector<32x128xbf16>
    %3 = arith.truncf %1 : vector<8x32xf32> to vector<8x32xbf16>
    %cst = arith.constant dense<0.000000e+00> : vector<8x128xf32>
    %4 = tpu.matmul %3, %2, %cst {dimension_numbers = #tpu.dot_dimension_numbers<[1], [0], [0], [1], [0, 0, 1, 1], [], []>} : vector<8x32xbf16>, vector<32x128xbf16>, vector<8x128xf32> -> vector<8x128xf32>
    %5 = vector.extract_strided_slice %0 {offsets = [0, 0], sizes = [1, 128], strides = [1, 1]} : vector<8x128xf32> to vector<1x128xf32>
    %6 = vector.broadcast %5 : vector<1x128xf32> to vector<8x128xf32>
    %7 = arith.addf %4, %6 : vector<8x128xf32>
    %cst_5 = arith.constant 0.000000e+00 : f32
    %8 = vector.broadcast %cst_5 : f32 to vector<8x128xf32>
    %9 = arith.cmpf ogt, %7, %8 : vector<8x128xf32>
    %cst_6 = arith.constant 0.00999999977 : f32
    %10 = vector.broadcast %cst_6 : f32 to vector<8x128xf32>
    %11 = arith.mulf %10, %7 : vector<8x128xf32>
    %12 = arith.select %9, %7, %11 : vector<8x128xi1>, vector<8x128xf32>
    %c128 = arith.constant 128 : index
    %c0_7 = arith.constant 0 : index
    %13 = vector.load %arg2[%c128, %c0_7] : memref<512x128xbf16, #tpu.memory_space<vmem>>, vector<128x128xbf16>
    %14 = arith.truncf %12 : vector<8x128xf32> to vector<8x128xbf16>
    %cst_8 = arith.constant dense<0.000000e+00> : vector<8x128xf32>
    %15 = tpu.matmul %14, %13, %cst_8 {dimension_numbers = #tpu.dot_dimension_numbers<[1], [0], [0], [1], [0, 0, 1, 1], [], []>} : vector<8x128xbf16>, vector<128x128xbf16>, vector<8x128xf32> -> vector<8x128xf32>
    %16 = vector.extract_strided_slice %0 {offsets = [1, 0], sizes = [1, 128], strides = [1, 1]} : vector<8x128xf32> to vector<1x128xf32>
    %17 = vector.broadcast %16 : vector<1x128xf32> to vector<8x128xf32>
    %18 = arith.addf %15, %17 : vector<8x128xf32>
    %cst_9 = arith.constant 0.000000e+00 : f32
    %19 = vector.broadcast %cst_9 : f32 to vector<8x128xf32>
    %20 = arith.cmpf ogt, %18, %19 : vector<8x128xf32>
    %cst_10 = arith.constant 0.00999999977 : f32
    %21 = vector.broadcast %cst_10 : f32 to vector<8x128xf32>
    %22 = arith.mulf %21, %18 : vector<8x128xf32>
    %23 = arith.select %20, %18, %22 : vector<8x128xi1>, vector<8x128xf32>
    %c256 = arith.constant 256 : index
    %c0_11 = arith.constant 0 : index
    %24 = vector.load %arg2[%c256, %c0_11] : memref<512x128xbf16, #tpu.memory_space<vmem>>, vector<128x128xbf16>
    %25 = arith.truncf %23 : vector<8x128xf32> to vector<8x128xbf16>
    %cst_12 = arith.constant dense<0.000000e+00> : vector<8x128xf32>
    %26 = tpu.matmul %25, %24, %cst_12 {dimension_numbers = #tpu.dot_dimension_numbers<[1], [0], [0], [1], [0, 0, 1, 1], [], []>} : vector<8x128xbf16>, vector<128x128xbf16>, vector<8x128xf32> -> vector<8x128xf32>
    %27 = vector.extract_strided_slice %0 {offsets = [2, 0], sizes = [1, 128], strides = [1, 1]} : vector<8x128xf32> to vector<1x128xf32>
    %28 = vector.broadcast %27 : vector<1x128xf32> to vector<8x128xf32>
    %29 = arith.addf %26, %28 : vector<8x128xf32>
    %cst_13 = arith.constant 0.000000e+00 : f32
    %30 = vector.broadcast %cst_13 : f32 to vector<8x128xf32>
    %31 = arith.cmpf ogt, %29, %30 : vector<8x128xf32>
    %cst_14 = arith.constant 0.00999999977 : f32
    %32 = vector.broadcast %cst_14 : f32 to vector<8x128xf32>
    %33 = arith.mulf %32, %29 : vector<8x128xf32>
    %34 = arith.select %31, %29, %33 : vector<8x128xi1>, vector<8x128xf32>
    %c384 = arith.constant 384 : index
    %c0_15 = arith.constant 0 : index
    %35 = vector.load %arg2[%c384, %c0_15] : memref<512x128xbf16, #tpu.memory_space<vmem>>, vector<128x32xbf16>
    %36 = arith.truncf %34 : vector<8x128xf32> to vector<8x128xbf16>
    %cst_16 = arith.constant dense<0.000000e+00> : vector<8x32xf32>
    %37 = tpu.matmul %36, %35, %cst_16 {dimension_numbers = #tpu.dot_dimension_numbers<[1], [0], [0], [1], [0, 0, 1, 1], [], []>} : vector<8x128xbf16>, vector<128x32xbf16>, vector<8x32xf32> -> vector<8x32xf32>
    %38 = vector.extract_strided_slice %0 {offsets = [3, 0], sizes = [1, 32], strides = [1, 1]} : vector<8x128xf32> to vector<1x32xf32>
    %39 = vector.broadcast %38 : vector<1x32xf32> to vector<8x32xf32>
    %40 = arith.addf %37, %39 : vector<8x32xf32>
    %41 = tpu.iota {dimensions = array<i32: 1>} : vector<8x32xi32>
    %c16_i32 = arith.constant 16 : i32
    %42 = vector.broadcast %c16_i32 : i32 to vector<8x32xi32>
    %43 = arith.cmpi slt, %41, %42 : vector<8x32xi32>
    %cst_17 = arith.constant -1.000000e+30 : f32
    %44 = vector.broadcast %cst_17 : f32 to vector<8x32xf32>
    %45 = arith.select %43, %40, %44 : vector<8x32xi1>, vector<8x32xf32>
    %cst_18 = arith.constant dense<0xFF800000> : vector<8xf32>
    %46 = vector.multi_reduction <maximumf>, %45, %cst_18 [1] : vector<8x32xf32> to vector<8xf32>
    %47 = vector.shape_cast %46 : vector<8xf32> to vector<8x1xf32>
    %48 = vector.broadcast %47 : vector<8x1xf32> to vector<8x32xf32>
    %49 = arith.subf %45, %48 : vector<8x32xf32>
    %50 = math.exp %49 : vector<8x32xf32>
    %cst_19 = arith.constant dense<0.000000e+00> : vector<8xf32>
    %51 = vector.multi_reduction <add>, %50, %cst_19 [1] : vector<8x32xf32> to vector<8xf32>
    %52 = vector.shape_cast %51 : vector<8xf32> to vector<8x1xf32>
    %53 = math.log %52 : vector<8x1xf32>
    %54 = vector.broadcast %53 : vector<8x1xf32> to vector<8x32xf32>
    %55 = arith.subf %49, %54 : vector<8x32xf32>
    %56 = vector.extract_strided_slice %55 {offsets = [0, 0], sizes = [8, 16], strides = [1, 1]} : vector<8x32xf32> to vector<8x16xf32>
    %c0_20 = arith.constant 0 : index
    %c0_21 = arith.constant 0 : index
    %57 = vector.load %arg4[%c0_20, %c0_21] : memref<8x16xf32, #tpu.memory_space<vmem>>, vector<8x16xf32>
    tpu.vector_store %arg4[%c0_20, %c0_21], %56 {strides = array<i32>} : memref<8x16xf32, #tpu.memory_space<vmem>>, vector<8x16xf32>,
    %58 = vector.extract_strided_slice %40 {offsets = [0, 16], sizes = [8, 1], strides = [1, 1]} : vector<8x32xf32> to vector<8x1xf32>
    %c0_22 = arith.constant 0 : index
    %c0_23 = arith.constant 0 : index
    %59 = vector.load %arg5[%c0_22, %c0_23] : memref<8x1xf32, #tpu.memory_space<vmem>>, vector<8x1xf32>
    tpu.vector_store %arg5[%c0_22, %c0_23], %58 {strides = array<i32>} : memref<8x1xf32, #tpu.memory_space<vmem>>, vector<8x1xf32>,
    return
  }
  func.func @transform_0(%arg0: i32) -> (i32, i32) {
    %c0_i32 = arith.constant 0 : i32
    %c0_i32_0 = arith.constant 0 : i32
    return %arg0, %c0_i32 : i32, i32
  }
  func.func @transform_1(%arg0: i32) -> (i32, i32) {
    %c0_i32 = arith.constant 0 : i32
    %c0_i32_0 = arith.constant 0 : i32
    %c0_i32_1 = arith.constant 0 : i32
    return %c0_i32, %c0_i32_0 : i32, i32
  }
  func.func @transform_2(%arg0: i32) -> (i32, i32) {
    %c0_i32 = arith.constant 0 : i32
    %c0_i32_0 = arith.constant 0 : i32
    %c0_i32_1 = arith.constant 0 : i32
    return %c0_i32, %c0_i32_0 : i32, i32
  }
  func.func @transform_3(%arg0: i32) -> (i32, i32) {
    %c0_i32 = arith.constant 0 : i32
    %c0_i32_0 = arith.constant 0 : i32
    return %arg0, %c0_i32 : i32, i32
  }
  func.func @transform_4(%arg0: i32) -> (i32, i32) {
    %c0_i32 = arith.constant 0 : i32
    %c0_i32_0 = arith.constant 0 : i32
    return %arg0, %c0_i32 : i32, i32
  }
}

</mosaic_0001>

<llo_original>
// kernel: a2c_forward.1
$region0: #{a2c_forward.1}
  #allocation0 [shape = 'u32[]', space=smem, size = 0x4, offset = 0x4, fixed_abs, tag = 'smem constant byte address 0x4 - core index']
  #allocation1 [shape = 'u32[144,128]{1,0:T(1,128)}', space=vmem, size = 0x12000, scoped, tag = 'internal scratch']
  %s0 = inlined_call_operand.hbm [shape: f32[8,32], index: 0, kind: input, shape index: {}]
  %s1 = inlined_call_operand.hbm [shape: bf16[512,128], index: 1, kind: input, shape index: {}]
  %s2 = inlined_call_operand.hbm [shape: f32[8,128], index: 2, kind: input, shape index: {}]
  %s3 = inlined_call_operand.hbm [shape: f32[8,16], index: 3, kind: output, shape index: {0}]
  %s4 = inlined_call_operand.vmem [shape: f32[8,1], index: 4, kind: output, shape index: {1}]
  %5 = xla_tuple %s3, %s4
  %s6 = sld [smem:[#allocation0]]
  $region42: #{a2c_forward.1} parent=0
    _
  %s8 = ssub.s32 1, %s6
  %s9 = scalar_select 0, %s8, %s6
  $region1: #{a2c_forward.1} parent=0
    #allocation2 [shape = 'u8[4096]{0}', space=vmem, size = 0x1000, scoped, tag = 'input window, operand 0, single buffered']
    #allocation3 [shape = 's32[1]{0}', space=sflag, size = 0x4, scoped, tag = 'scoped memory for a2c_forward.1']
    #allocation4 [shape = 's32[1]{0}', space=sflag, size = 0x4, scoped, tag = 'scoped memory for a2c_forward.1']
    #allocation5 [shape = 'u8[131072]{0}', space=vmem, size = 0x20000, scoped, tag = 'input window, operand 1, single buffered']
    #allocation6 [shape = 's32[1]{0}', space=sflag, size = 0x4, scoped, tag = 'scoped memory for a2c_forward.1']
    #allocation7 [shape = 'u8[4096]{0}', space=vmem, size = 0x1000, scoped, tag = 'input window, operand 2, single buffered']
    #allocation8 [shape = 'u8[4096]{0}', space=vmem, size = 0x1000, scoped, tag = 'output window, operand 0, single buffered']
    %10 = vsyncpa [#allocation3], 0
    %11 = vsyncpa [#allocation6], 0
    %12 = vsyncpa [#allocation4], 0
    // Predicated region
    $region2: #{a2c_forward.1} parent=1 // pred_check
      _
    $region3: #{a2c_forward.1} parent=1 // pred_check_branch
      %14 = sbr.rel (0) target = $region5
    $region4: #{a2c_forward.1} parent=1 // pred_region
      %s16 = ssub.s32 128, 128
      %17 = vsyncadd [#allocation3], %s16
      %s19 = sshll.u32 [#allocation2], 4
      %s20 = int_to_ptr.vmem [resolvable:$true] %s19
      %22 = dma.hbm_to_vmem [thread:$0]  %s0, 128, %s20, [#allocation3]
    $region5: #{a2c_forward.1} parent=1 // pred_fallthru
      _
    // Predicated region
    $region6: #{a2c_forward.1} parent=1 // pred_check
      _
    $region7: #{a2c_forward.1} parent=1 // pred_check_branch
      %24 = sbr.rel (0) target = $region9
    $region8: #{a2c_forward.1} parent=1 // pred_region
      %s26 = ssub.s32 4096, 4096
      %27 = vsyncadd [#allocation6], %s26
      %s28 = sshll.u32 [#allocation5], 4
      %s29 = int_to_ptr.vmem [resolvable:$true] %s28
      %34 = dma.hbm_to_vmem [thread:$0]  %s1, 4096, %s29, [#allocation6], 64, 64, 4
    $region9: #{a2c_forward.1} parent=1 // pred_fallthru
      _
    // Predicated region
    $region10: #{a2c_forward.1} parent=1 // pred_check
      _
    $region11: #{a2c_forward.1} parent=1 // pred_check_branch
      %36 = sbr.rel (0) target = $region13
    $region12: #{a2c_forward.1} parent=1 // pred_region
      %s38 = ssub.s32 128, 128
      %39 = vsyncadd [#allocation6], %s38
      %s41 = sshll.u32 [#allocation7], 4
      %s42 = int_to_ptr.vmem [resolvable:$true] %s41
      %44 = dma.hbm_to_vmem [thread:$0]  %s2, 128, %s42, [#allocation6]
    $region13: #{a2c_forward.1} parent=1 // pred_fallthru
      _
    // Predicated region
    $region14: #{a2c_forward.1} parent=1 // pred_check
      _
    $region15: #{a2c_forward.1} parent=1 // pred_check_branch
      %46 = sbr.rel (0) target = $region17
    $region16: #{a2c_forward.1} parent=1 // pred_region
      %47 = dma.done [#allocation3], 128
    $region17: #{a2c_forward.1} parent=1 // pred_fallthru
      _
    // Predicated region
    $region18: #{a2c_forward.1} parent=1 // pred_check
      _
    $region19: #{a2c_forward.1} parent=1 // pred_check_branch
      %49 = sbr.rel (0) target = $region21
    $region20: #{a2c_forward.1} parent=1 // pred_region
      %50 = dma.done [#allocation6], 4096
    $region21: #{a2c_forward.1} parent=1 // pred_fallthru
      _
    // Predicated region
    $region22: #{a2c_forward.1} parent=1 // pred_check
      _
    $region23: #{a2c_forward.1} parent=1 // pred_check_branch
      %52 = sbr.rel (0) target = $region25
    $region24: #{a2c_forward.1} parent=1 // pred_region
      %53 = dma.done [#allocation6], 128
    $region25: #{a2c_forward.1} parent=1 // pred_fallthru
      _
    %v55 = vld [vmem:[#allocation7] sm:$0xff]
    %v56 = vld [vmem:[#allocation2] sm:$0xff]
    %v57 = vld [vmem:[#allocation5] sm:$0xf]
    %v58 = vld [vmem:[#allocation5 + $0x4] sm:$0xf]
    %v59 = vld [vmem:[#allocation5 + $0x8] sm:$0xf]
    %v60 = vld [vmem:[#allocation5 + $0xc] sm:$0xf]
    %v61 = vpack.c.bf16 %v56, %v56
    %v62 = vlaneseq
    %v63 = vshrl.u32 %v62, 7
    %v64 = vsub.s32 0, %v63
    %v65 = vrot.slane %v55, %v64
    %v70 = vunpack.c.l.b16 %v57
    %v71 = vunpack.c.l.b16 %v58
    %v72 = vunpack.c.l.b16 %v59
    %v73 = vunpack.c.l.b16 %v60
    %v74 = vpack.c.b16 %v71, %v70
    %v75 = vpack.c.b16 %v73, %v72
    %vm78 = vcmask 261120
    %v80 = vsel %vm78, %v61, 0
    %82 = vmatprep.subr.bf16.mxu0 0
    %83 = vmatpush1.bf16.msra.mxu0 0
    %84 = vmatprep.subr.bf16.mxu0 0
    %85 = vmatpush1.bf16.msra.mxu0 0
    %86 = vmatprep.subr.bf16.mxu0 0
    %87 = vmatpush1.bf16.msra.mxu0 0
    %88 = vmatprep.subr.bf16.mxu0 0
    %89 = vmatpush1.bf16.msra.mxu0 0
    %90 = vmatprep.subr.bf16.mxu0 0
    %91 = vmatpush1.bf16.msra.mxu0 0
    %92 = vmatprep.subr.bf16.mxu0 0
    %93 = vmatpush1.bf16.msra.mxu0 0
    %94 = vmatprep.subr.bf16.mxu0 0
    %95 = vmatpush1.bf16.msra.mxu0 %v75
    %96 = vmatprep.subr.bf16.mxu0 0
    %97 = vmatpush1.bf16.msra.mxu0 %v74
    %98 = vmatprep.subr.bf16.mxu0 0
    %99 = vmatpush2.bf16.msra.mxu0 0
    %100 = vmatprep.subr.bf16.mxu0 0
    %101 = vmatpush2.bf16.msra.mxu0 0
    %102 = vmatprep.subr.bf16.mxu0 0
    %103 = vmatpush2.bf16.msra.mxu0 0
    %104 = vmatprep.subr.bf16.mxu0 0
    %105 = vmatpush2.bf16.msra.mxu0 0
    %106 = vmatprep.subr.bf16.mxu0 0
    %107 = vmatpush2.bf16.msra.mxu0 0
    %108 = vmatprep.subr.bf16.mxu0 0
    %109 = vmatpush2.bf16.msra.mxu0 0
    %110 = vmatprep.subr.bf16.mxu0 0
    %111 = vmatpush2.bf16.msra.mxu0 0
    %112 = vmatprep.subr.bf16.mxu0 0
    %113 = vmatpush2.bf16.msra.mxu0 0
    %114 = vmatprep.mubr.bf16.mxu0 0
    %115 = vmatmul.mubr.bf16.gmra.mxu0 %v80
    %v116 = vpop.f32.mrf.mxu0
    %v117 = vadd.f32 %v65, %v116
    %v118 = vpop.f32.mrf.mxu0
    %v119 = vpop.f32.mrf.mxu0
    %v120 = vpop.f32.mrf.mxu0
    %121 = vdwg.mxu0
    %vm122 = vcmp.gt.f32.partialorder %v117, 0.0
    %v123 = vmul.f32 %v117, 0.01
    %v124 = vsel %vm122, %v117, %v123
    %v125 = vld [vmem:[#allocation5 + $0x40] sm:$0xf]
    %v126 = vld [vmem:[#allocation5 + $0x44] sm:$0xf]
    %v127 = vld [vmem:[#allocation5 + $0x48] sm:$0xf]
    %v128 = vld [vmem:[#allocation5 + $0x4c] sm:$0xf]
    %v129 = vld [vmem:[#allocation5 + $0x50] sm:$0xf]
    %v130 = vld [vmem:[#allocation5 + $0x54] sm:$0xf]
    %v131 = vld [vmem:[#allocation5 + $0x58] sm:$0xf]
    %v132 = vld [vmem:[#allocation5 + $0x5c] sm:$0xf]
    %v133 = vld [vmem:[#allocation5 + $0x60] sm:$0xf]
    %v134 = vld [vmem:[#allocation5 + $0x64] sm:$0xf]
    %v135 = vld [vmem:[#allocation5 + $0x68] sm:$0xf]
    %v136 = vld [vmem:[#allocation5 + $0x6c] sm:$0xf]
    %v137 = vld [vmem:[#allocation5 + $0x70] sm:$0xf]
    %v138 = vld [vmem:[#allocation5 + $0x74] sm:$0xf]
    %v139 = vld [vmem:[#allocation5 + $0x78] sm:$0xf]
    %v140 = vld [vmem:[#allocation5 + $0x7c] sm:$0xf]
    %v141 = vpack.c.bf16 %v124, %v124
    %v142 = vlaneseq
    %v143 = vshrl.u32 %v142, 7
    %v144 = vsub.s32 1, %v143
    %v145 = vrot.slane %v55, %v144
    %v162 = vunpack.c.l.b16 %v125
    %v163 = vunpack.c.l.b16 %v126
    %v164 = vunpack.c.l.b16 %v127
    %v165 = vunpack.c.l.b16 %v128
    %v166 = vunpack.c.l.b16 %v129
    %v167 = vunpack.c.l.b16 %v130
    %v168 = vunpack.c.l.b16 %v131
    %v169 = vunpack.c.l.b16 %v132
    %v170 = vunpack.c.l.b16 %v133
    %v171 = vunpack.c.l.b16 %v134
    %v172 = vunpack.c.l.b16 %v135
    %v173 = vunpack.c.l.b16 %v136
    %v174 = vunpack.c.l.b16 %v137
    %v175 = vunpack.c.l.b16 %v138
    %v176 = vunpack.c.l.b16 %v139
    %v177 = vunpack.c.l.b16 %v140
    %v178 = vpack.c.b16 %v163, %v162
    %v179 = vpack.c.b16 %v165, %v164
    %v180 = vpack.c.b16 %v167, %v166
    %v181 = vpack.c.b16 %v169, %v168
    %v182 = vpack.c.b16 %v171, %v170
    %v183 = vpack.c.b16 %v173, %v172
    %v184 = vpack.c.b16 %v175, %v174
    %v185 = vpack.c.b16 %v177, %v176
    %194 = vmatprep.subr.bf16.mxu0 0
    %195 = vmatpush1.bf16.msra.mxu0 %v185
    %196 = vmatprep.subr.bf16.mxu0 0
    %197 = vmatpush1.bf16.msra.mxu0 %v184
    %198 = vmatprep.subr.bf16.mxu0 0
    %199 = vmatpush1.bf16.msra.mxu0 %v183
    %200 = vmatprep.subr.bf16.mxu0 0
    %201 = vmatpush1.bf16.msra.mxu0 %v182
    %202 = vmatprep.subr.bf16.mxu0 0
    %203 = vmatpush1.bf16.msra.mxu0 %v181
    %204 = vmatprep.subr.bf16.mxu0 0
    %205 = vmatpush1.bf16.msra.mxu0 %v180
    %206 = vmatprep.subr.bf16.mxu0 0
    %207 = vmatpush1.bf16.msra.mxu0 %v179
    %208 = vmatprep.subr.bf16.mxu0 0
    %209 = vmatpush1.bf16.msra.mxu0 %v178
    %210 = vmatprep.subr.bf16.mxu0 0
    %211 = vmatpush2.bf16.msra.mxu0 0
    %212 = vmatprep.subr.bf16.mxu0 0
    %213 = vmatpush2.bf16.msra.mxu0 0
    %214 = vmatprep.subr.bf16.mxu0 0
    %215 = vmatpush2.bf16.msra.mxu0 0
    %216 = vmatprep.subr.bf16.mxu0 0
    %217 = vmatpush2.bf16.msra.mxu0 0
    %218 = vmatprep.subr.bf16.mxu0 0
    %219 = vmatpush2.bf16.msra.mxu0 0
    %220 = vmatprep.subr.bf16.mxu0 0
    %221 = vmatpush2.bf16.msra.mxu0 0
    %222 = vmatprep.subr.bf16.mxu0 0
    %223 = vmatpush2.bf16.msra.mxu0 0
    %224 = vmatprep.subr.bf16.mxu0 0
    %225 = vmatpush2.bf16.msra.mxu0 0
    %226 = vmatprep.mubr.bf16.mxu0 0
    %227 = vmatmul.mubr.bf16.gmra.mxu0 %v141
    %v228 = vpop.f32.mrf.mxu0
    %v229 = vadd.f32 %v145, %v228
    %v230 = vpop.f32.mrf.mxu0
    %v231 = vpop.f32.mrf.mxu0
    %v232 = vpop.f32.mrf.mxu0
    %233 = vdwg.mxu0
    %vm234 = vcmp.gt.f32.partialorder %v229, 0.0
    %v235 = vmul.f32 %v229, 0.01
    %v236 = vsel %vm234, %v229, %v235
    %v237 = vld [vmem:[#allocation5 + $0x80] sm:$0xf]
    %v238 = vld [vmem:[#allocation5 + $0x84] sm:$0xf]
    %v239 = vld [vmem:[#allocation5 + $0x88] sm:$0xf]
    %v240 = vld [vmem:[#allocation5 + $0x8c] sm:$0xf]
    %v241 = vld [vmem:[#allocation5 + $0x90] sm:$0xf]
    %v242 = vld [vmem:[#allocation5 + $0x94] sm:$0xf]
    %v243 = vld [vmem:[#allocation5 + $0x98] sm:$0xf]
    %v244 = vld [vmem:[#allocation5 + $0x9c] sm:$0xf]
    %v245 = vld [vmem:[#allocation5 + $0xa0] sm:$0xf]
    %v246 = vld [vmem:[#allocation5 + $0xa4] sm:$0xf]
    %v247 = vld [vmem:[#allocation5 + $0xa8] sm:$0xf]
    %v248 = vld [vmem:[#allocation5 + $0xac] sm:$0xf]
    %v249 = vld [vmem:[#allocation5 + $0xb0] sm:$0xf]
    %v250 = vld [vmem:[#allocation5 + $0xb4] sm:$0xf]
    %v251 = vld [vmem:[#allocation5 + $0xb8] sm:$0xf]
    %v252 = vld [vmem:[#allocation5 + $0xbc] sm:$0xf]
    %v253 = vpack.c.bf16 %v236, %v236
    %v254 = vlaneseq
    %v255 = vshrl.u32 %v254, 7
    %v256 = vsub.s32 2, %v255
    %v257 = vrot.slane %v55, %v256
    %v274 = vunpack.c.l.b16 %v237
    %v275 = vunpack.c.l.b16 %v238
    %v276 = vunpack.c.l.b16 %v239
    %v277 = vunpack.c.l.b16 %v240
    %v278 = vunpack.c.l.b16 %v241
    %v279 = vunpack.c.l.b16 %v242
    %v280 = vunpack.c.l.b16 %v243
    %v281 = vunpack.c.l.b16 %v244
    %v282 = vunpack.c.l.b16 %v245
    %v283 = vunpack.c.l.b16 %v246
    %v284 = vunpack.c.l.b16 %v247
    %v285 = vunpack.c.l.b16 %v248
    %v286 = vunpack.c.l.b16 %v249
    %v287 = vunpack.c.l.b16 %v250
    %v288 = vunpack.c.l.b16 %v251
    %v289 = vunpack.c.l.b16 %v252
    %v290 = vpack.c.b16 %v275, %v274
    %v291 = vpack.c.b16 %v277, %v276
    %v292 = vpack.c.b16 %v279, %v278
    %v293 = vpack.c.b16 %v281, %v280
    %v294 = vpack.c.b16 %v283, %v282
    %v295 = vpack.c.b16 %v285, %v284
    %v296 = vpack.c.b16 %v287, %v286
    %v297 = vpack.c.b16 %v289, %v288
    %306 = vmatprep.subr.bf16.mxu0 0
    %307 = vmatpush1.bf16.msra.mxu0 %v297
    %308 = vmatprep.subr.bf16.mxu0 0
    %309 = vmatpush1.bf16.msra.mxu0 %v296
    %310 = vmatprep.subr.bf16.mxu0 0
    %311 = vmatpush1.bf16.msra.mxu0 %v295
    %312 = vmatprep.subr.bf16.mxu0 0
    %313 = vmatpush1.bf16.msra.mxu0 %v294
    %314 = vmatprep.subr.bf16.mxu0 0
    %315 = vmatpush1.bf16.msra.mxu0 %v293
    %316 = vmatprep.subr.bf16.mxu0 0
    %317 = vmatpush1.bf16.msra.mxu0 %v292
    %318 = vmatprep.subr.bf16.mxu0 0
    %319 = vmatpush1.bf16.msra.mxu0 %v291
    %320 = vmatprep.subr.bf16.mxu0 0
    %321 = vmatpush1.bf16.msra.mxu0 %v290
    %322 = vmatprep.subr.bf16.mxu0 0
    %323 = vmatpush2.bf16.msra.mxu0 0
    %324 = vmatprep.subr.bf16.mxu0 0
    %325 = vmatpush2.bf16.msra.mxu0 0
    %326 = vmatprep.subr.bf16.mxu0 0
    %327 = vmatpush2.bf16.msra.mxu0 0
    %328 = vmatprep.subr.bf16.mxu0 0
    %329 = vmatpush2.bf16.msra.mxu0 0
    %330 = vmatprep.subr.bf16.mxu0 0
    %331 = vmatpush2.bf16.msra.mxu0 0
    %332 = vmatprep.subr.bf16.mxu0 0
    %333 = vmatpush2.bf16.msra.mxu0 0
    %334 = vmatprep.subr.bf16.mxu0 0
    %335 = vmatpush2.bf16.msra.mxu0 0
    %336 = vmatprep.subr.bf16.mxu0 0
    %337 = vmatpush2.bf16.msra.mxu0 0
    %338 = vmatprep.mubr.bf16.mxu0 0
    %339 = vmatmul.mubr.bf16.gmra.mxu0 %v253
    %v340 = vpop.f32.mrf.mxu0
    %v341 = vadd.f32 %v257, %v340
    %v342 = vpop.f32.mrf.mxu0
    %v343 = vpop.f32.mrf.mxu0
    %v344 = vpop.f32.mrf.mxu0
    %345 = vdwg.mxu0
    %vm346 = vcmp.gt.f32.partialorder %v341, 0.0
    %v347 = vmul.f32 %v341, 0.01
    %v348 = vsel %vm346, %v341, %v347
    %v349 = vld [vmem:[#allocation5 + $0xc0] sm:$0xf]
    %v350 = vld [vmem:[#allocation5 + $0xc4] sm:$0xf]
    %v351 = vld [vmem:[#allocation5 + $0xc8] sm:$0xf]
    %v352 = vld [vmem:[#allocation5 + $0xcc] sm:$0xf]
    %v353 = vld [vmem:[#allocation5 + $0xd0] sm:$0xf]
    %v354 = vld [vmem:[#allocation5 + $0xd4] sm:$0xf]
    %v355 = vld [vmem:[#allocation5 + $0xd8] sm:$0xf]
    %v356 = vld [vmem:[#allocation5 + $0xdc] sm:$0xf]
    %v357 = vld [vmem:[#allocation5 + $0xe0] sm:$0xf]
    %v358 = vld [vmem:[#allocation5 + $0xe4] sm:$0xf]
    %v359 = vld [vmem:[#allocation5 + $0xe8] sm:$0xf]
    %v360 = vld [vmem:[#allocation5 + $0xec] sm:$0xf]
    %v361 = vld [vmem:[#allocation5 + $0xf0] sm:$0xf]
    %v362 = vld [vmem:[#allocation5 + $0xf4] sm:$0xf]
    %v363 = vld [vmem:[#allocation5 + $0xf8] sm:$0xf]
    %v364 = vld [vmem:[#allocation5 + $0xfc] sm:$0xf]
    %v365 = vpack.c.bf16 %v348, %v348
    %v366 = vlaneseq
    %v367 = vshrl.u32 %v366, 7
    %v368 = vsub.s32 3, %v367
    %v369 = vrot.slane %v55, %v368
    %v386 = vunpack.c.l.b16 %v349
    %v387 = vunpack.c.l.b16 %v350
    %v388 = vunpack.c.l.b16 %v351
    %v389 = vunpack.c.l.b16 %v352
    %v390 = vunpack.c.l.b16 %v353
    %v391 = vunpack.c.l.b16 %v354
    %v392 = vunpack.c.l.b16 %v355
    %v393 = vunpack.c.l.b16 %v356
    %v394 = vunpack.c.l.b16 %v357
    %v395 = vunpack.c.l.b16 %v358
    %v396 = vunpack.c.l.b16 %v359
    %v397 = vunpack.c.l.b16 %v360
    %v398 = vunpack.c.l.b16 %v361
    %v399 = vunpack.c.l.b16 %v362
    %v400 = vunpack.c.l.b16 %v363
    %v401 = vunpack.c.l.b16 %v364
    %v402 = vpack.c.b16 %v387, %v386
    %v403 = vpack.c.b16 %v389, %v388
    %v404 = vpack.c.b16 %v391, %v390
    %v405 = vpack.c.b16 %v393, %v392
    %v406 = vpack.c.b16 %v395, %v394
    %v407 = vpack.c.b16 %v397, %v396
    %v408 = vpack.c.b16 %v399, %v398
    %v409 = vpack.c.b16 %v401, %v400
    %418 = vmatprep.subr.bf16.mxu0 0
    %419 = vmatpush1.bf16.msra.mxu0 %v409
    %420 = vmatprep.subr.bf16.mxu0 0
    %421 = vmatpush1.bf16.msra.mxu0 %v408
    %422 = vmatprep.subr.bf16.mxu0 0
    %423 = vmatpush1.bf16.msra.mxu0 %v407
    %424 = vmatprep.subr.bf16.mxu0 0
    %425 = vmatpush1.bf16.msra.mxu0 %v406
    %426 = vmatprep.subr.bf16.mxu0 0
    %427 = vmatpush1.bf16.msra.mxu0 %v405
    %428 = vmatprep.subr.bf16.mxu0 0
    %429 = vmatpush1.bf16.msra.mxu0 %v404
    %430 = vmatprep.subr.bf16.mxu0 0
    %431 = vmatpush1.bf16.msra.mxu0 %v403
    %432 = vmatprep.subr.bf16.mxu0 0
    %433 = vmatpush1.bf16.msra.mxu0 %v402
    %434 = vmatprep.subr.bf16.mxu0 0
    %435 = vmatpush2.bf16.msra.mxu0 0
    %436 = vmatprep.subr.bf16.mxu0 0
    %437 = vmatpush2.bf16.msra.mxu0 0
    %438 = vmatprep.subr.bf16.mxu0 0
    %439 = vmatpush2.bf16.msra.mxu0 0
    %440 = vmatprep.subr.bf16.mxu0 0
    %441 = vmatpush2.bf16.msra.mxu0 0
    %442 = vmatprep.subr.bf16.mxu0 0
    %443 = vmatpush2.bf16.msra.mxu0 0
    %444 = vmatprep.subr.bf16.mxu0 0
    %445 = vmatpush2.bf16.msra.mxu0 0
    %446 = vmatprep.subr.bf16.mxu0 0
    %447 = vmatpush2.bf16.msra.mxu0 0
    %448 = vmatprep.subr.bf16.mxu0 0
    %449 = vmatpush2.bf16.msra.mxu0 0
    %450 = vmatprep.mubr.bf16.mxu0 0
    %451 = vmatmul.mubr.bf16.gmra.mxu0 %v365
    %v452 = vpop.f32.mrf.mxu0
    %v453 = vadd.f32 %v369, %v452
    %v454 = vpop.f32.mrf.mxu0
    %v455 = vpop.f32.mrf.mxu0
    %v456 = vpop.f32.mrf.mxu0
    %457 = vdwg.mxu0
    %v458 = vlaneseq
    %v459 = vand.u32 %v458, 127
    %vm460 = vcmp.lt.s32.totalorder %v459, 16
    %v461 = vsel %vm460, %v453, -1e+30
    %v462 = vsel %vm78, %v461, -inf
    %463 = vmax.xlane.f32.xlu0 %v462
    %v464 = vpop.xlane.xlu0 %463
    %v465 = vsub.f32 %v461, %v464
    %v466 = vmul.f32 %v465, 1.442695
    %v467 = vpow.pop %v466
    %v468 = vsel %vm78, %v467, 0.0
    %469 = vadd.xlane.f32.xlu0 %v468
    %v470 = vpop.xlane.xlu0 %469
    %v471 = vlog2.pop %v470
    %v472 = vmul.f32 %v471, 0.6931472
    %v473 = vsub.f32 %v465, %v472
    %vm474 = vcmask 130048
    %475 = vst.msk [vmem:[#allocation8] sm:$0xff] %vm474, %v473
    %477 = vrot.lane.b32.xlu0 %v453, 112
    %v478 = vpop.permute.xlu0 %477
    %vm480 = vcmask 7168
    %481 = vst.msk [vmem:[%s4] sm:$0xff] %vm480, %v478
    // Predicated region
    $region26: #{a2c_forward.1} parent=1 // pred_check
      _
    $region27: #{a2c_forward.1} parent=1 // pred_check_branch
      %483 = sbr.rel (0) target = $region29
    $region28: #{a2c_forward.1} parent=1 // pred_region
      %s485 = ssub.s32 128, 128
      %486 = vsyncadd [#allocation4], %s485
      %s488 = sshll.u32 [#allocation8], 4
      %s489 = int_to_ptr.vmem [resolvable:$true] %s488
      %491 = dma.vmem_to_hbm [thread:$0]  %s489, 128, %s3, [#allocation4]
    $region29: #{a2c_forward.1} parent=1 // pred_fallthru
      _
    // Predicated region
    $region30: #{a2c_forward.1} parent=1 // pred_check
      _
    $region31: #{a2c_forward.1} parent=1 // pred_check_branch
      %493 = sbr.rel (0) target = $region33
    $region32: #{a2c_forward.1} parent=1 // pred_region
      _
    $region33: #{a2c_forward.1} parent=1 // pred_fallthru
      _
    // Predicated region
    $region34: #{a2c_forward.1} parent=1 // pred_check
      _
    $region35: #{a2c_forward.1} parent=1 // pred_check_branch
      %495 = sbr.rel (0) target = $region37
    $region36: #{a2c_forward.1} parent=1 // pred_region
      %496 = dma.done [#allocation4], 128
    $region37: #{a2c_forward.1} parent=1 // pred_fallthru
      _
    // Predicated region
    $region38: #{a2c_forward.1} parent=1 // pred_check
      _
    $region39: #{a2c_forward.1} parent=1 // pred_check_branch
      %498 = sbr.rel (0) target = $region41
    $region40: #{a2c_forward.1} parent=1 // pred_region
      _
    $region41: #{a2c_forward.1} parent=1 // pred_fallthru
      _
    %499 = vsyncpa [#allocation3], 1
    %500 = vsyncpa [#allocation6], 1
    %501 = vsyncpa [#allocation4], 1

</llo_original>
